<compile_context>
chip_gen: v7x
topology: tpu7x:2x2x1
jax: 0.10.0
libtpu: 0.0.40
codegen_flags: <defaults>
</compile_context>

<pallas_src>
import functools

import jax
import jax.numpy as jnp
from jax.experimental import pallas as pl
from jax.experimental.pallas import tpu as pltpu

_LANE = 128
_SUBLANE = 8


def _round_up(v, m):
    return (v + m - 1) // m * m


def _fused_mlp_kernel(num_hidden,
                      x_ref,             # (TB, TK)   flattened input K-slab (original dtype)
                      w0_ref,            # (TK, H_pad) bottom-linear K-slab (+bn_1 folded)
                      b0_ref,            # (1, H_pad)  bottom bias (f32)
                      wst_ref, bst_ref,  # (NH, H_pad, H_pad), (NH, 1, H_pad)  fc_i (+next BN folded)
                      wf_ref, bf_ref,    # (H_pad, C_pad), (1, C_pad)  fc_final
                      o_ref,             # (TB, C_pad)
                      acc_ref):          # (TB, H_pad) f32 scratch accumulator
    k = pl.program_id(1)

    @pl.when(k == 0)
    def _():
        acc_ref[...] = jnp.zeros_like(acc_ref)

    # bottom-model stand-in (flatten + linear, bn_1 folded): K-tiled MXU accumulation.
    acc_ref[...] += jnp.dot(x_ref[...].astype(w0_ref.dtype), w0_ref[...],
                            preferred_element_type=jnp.float32)

    @pl.when(k == pl.num_programs(1) - 1)
    def _():
        h = acc_ref[...] + b0_ref[...]
        # hidden blocks: ReLU -> Linear (each Linear already carries its following BN affine)
        for i in range(num_hidden):                       # static unroll
            h = jnp.maximum(h, 0.0)
            h = jnp.dot(h.astype(wst_ref.dtype), wst_ref[i],
                        preferred_element_type=jnp.float32) + bst_ref[i]
        # final: ReLU -> fc_final (bn_final already folded into the previous linear)
        h = jnp.maximum(h, 0.0)
        o_ref[...] = (jnp.dot(h.astype(wf_ref.dtype), wf_ref[...],
                              preferred_element_type=jnp.float32)
                      + bf_ref[...]).astype(o_ref.dtype)


def _fold_and_pad_params(params, num_hidden, D_pad, H_pad, C_pad, compute_dtype):
    """Fold eval-mode BN affines into the preceding linears and zero-pad to lane width."""
    # chain of linears whose *output* has a BN applied to it:
    #   stage 0 = bottom model, stage i = fc_i (i = 1..num_hidden)
    w_chain = [params['w_bottom']] + [params['w_stack'][i] for i in range(num_hidden)]
    b_chain = [params['b_bottom'].reshape(1, -1)] + \
              [params['b_stack'][i].reshape(1, -1) for i in range(num_hidden)]
    # BN on output of stage j -> bn_{j+1}; last stage -> bn_final
    scales = [params['bn_scale_stack'][i].reshape(1, -1) for i in range(num_hidden)] \
             + [params['bn_scale_final'].reshape(1, -1)]
    shifts = [params['bn_shift_stack'][i].reshape(1, -1) for i in range(num_hidden)] \
             + [params['bn_shift_final'].reshape(1, -1)]
    for j in range(len(w_chain)):
        w_chain[j] = w_chain[j] * scales[j]
        b_chain[j] = b_chain[j] * scales[j] + shifts[j]

    def pad2(a, rows, cols):
        return jnp.pad(a, ((0, rows - a.shape[0]), (0, cols - a.shape[1])))

    w0 = pad2(w_chain[0], D_pad, H_pad).astype(compute_dtype)
    b0 = pad2(b_chain[0], 1, H_pad).astype(jnp.float32)

    if num_hidden > 0:
        wst = jnp.stack([pad2(w_chain[1 + i], H_pad, H_pad) for i in range(num_hidden)])
        bst = jnp.stack([pad2(b_chain[1 + i], 1, H_pad) for i in range(num_hidden)])
    else:
        # TODO(synk): specialize the kernel signature for num_hidden == 0 instead of a dummy slot.
        wst = jnp.zeros((1, H_pad, H_pad), jnp.float32)
        bst = jnp.zeros((1, 1, H_pad), jnp.float32)
    wst = wst.astype(compute_dtype)
    bst = bst.astype(jnp.float32)

    wf = pad2(params['w_final'], H_pad, C_pad).astype(compute_dtype)
    bf = pad2(params['b_final'].reshape(1, -1), 1, C_pad).astype(jnp.float32)
    return w0, b0, wst, bst, wf, bf


def _pick_tiles(B, D_in, H_pad, C_pad, NH, x_itemsize, w_itemsize, vmem_budget):
    """Pick (TB, TK) to maximize the streamed batch tile while fitting the VMEM budget
    (accounting for Pallas's default double-buffering of every operand)."""
    B8 = _round_up(B, _SUBLANE)
    TB = min(512, B8)
    if B8 >= 2 * _SUBLANE:
        # keep at least 2 grid steps along the parallel batch axis (v7x has 2 TCs)
        TB = min(TB, _round_up((B8 + 1) // 2, _SUBLANE))

    bias_bytes = (H_pad + NH * H_pad + C_pad) * 4

    def need(tb, tk):
        return (2 * tb * tk * x_itemsize                # x slab, double-buffered
                + 2 * tb * C_pad * 4                    # out tile, double-buffered
                + tb * H_pad * 4                        # f32 accumulator scratch
                + 2 * (tk * H_pad * w_itemsize          # w_bottom K-slab
                       + NH * H_pad * H_pad * w_itemsize
                       + H_pad * C_pad * w_itemsize
                       + bias_bytes))                   # resident fc weights / biases

    D_128 = _round_up(max(D_in, 1), _LANE)
    tk_cap = min(D_128, 2048)
    TK = _LANE
    # prefer the largest multiple-of-128 divisor of D_128 (avoids extra feature padding)
    for cand in range(tk_cap, _LANE - 1, -_LANE):
        if D_128 % cand == 0 and need(TB, cand) <= vmem_budget:
            TK = cand
            break
    while need(TB, TK) > vmem_budget and TB > _SUBLANE:
        TB = _round_up(max(_SUBLANE, TB // 2), _SUBLANE)
    return TB, TK, need(TB, TK)


def bottom_model_plus_forward(x, params, *, num_layer=5, activation='ReLU',
                              use_bn=True, compute_dtype=jnp.bfloat16):
    """Pallas forward for BottomModelPlus (activation='ReLU', use_bn=True path)."""
    assert activation == 'ReLU' and use_bn, "kernel implements the ReLU + BN path"

    B = x.shape[0]
    x_flat = x.reshape(B, -1)
    D_in = x_flat.shape[1]
    H = params['w_bottom'].shape[1]
    C = params['w_final'].shape[1]
    num_hidden = max(0, min(num_layer - 1, 4))
    NH = max(num_hidden, 1)
    H_pad = _round_up(H, _LANE)
    C_pad = _round_up(C, _LANE)

    w_itemsize = jnp.dtype(compute_dtype).itemsize
    x_itemsize = x_flat.dtype.itemsize

    # per-TensorCore VMEM capacity: 64 MiB on v7x, 128 MiB on v5e/v6e
    try:
        vmem_cap = int(getattr(pltpu.get_tpu_info(), "vmem_capacity_bytes",
                               64 * 1024 * 1024))
    except Exception:
        vmem_cap = 64 * 1024 * 1024
    vmem_budget = vmem_cap - 16 * 1024 * 1024   # headroom for Mosaic internal scratch

    TB, TK, needed = _pick_tiles(B, D_in, H_pad, C_pad, NH,
                                 x_itemsize, w_itemsize, vmem_budget)
    B_pad = _round_up(B, TB)
    D_pad = _round_up(D_in, TK)

    w0, b0, wst, bst, wf, bf = _fold_and_pad_params(
        params, num_hidden, D_pad, H_pad, C_pad, compute_dtype)

    # Feed x in its original dtype; pad only if the tile grid actually requires it.
    if (B_pad, D_pad) == (B, D_in):
        x_in = x_flat
    else:
        x_in = jnp.pad(x_flat, ((0, B_pad - B), (0, D_pad - D_in)))

    grid = (B_pad // TB, D_pad // TK)
    kernel = functools.partial(_fused_mlp_kernel, num_hidden)

    flops = 2 * B_pad * (D_pad * H_pad + num_hidden * H_pad * H_pad + H_pad * C_pad)
    bytes_accessed = (B_pad * D_pad * x_itemsize + B_pad * C_pad * 4
                      + (D_pad * H_pad + NH * H_pad * H_pad + H_pad * C_pad) * w_itemsize
                      + (H_pad + NH * H_pad + C_pad) * 4)
    vmem_limit = int(min(vmem_cap - 8 * 1024 * 1024,
                         max(32 * 1024 * 1024, needed * 3 // 2 + 2 * 1024 * 1024)))

    out_pad = pl.pallas_call(
        kernel,
        out_shape=jax.ShapeDtypeStruct((B_pad, C_pad), jnp.float32),
        grid=grid,
        in_specs=[
            pl.BlockSpec((TB, TK), lambda i, k: (i, k)),               # x (streamed)
            pl.BlockSpec((TK, H_pad), lambda i, k: (k, 0)),            # w_bottom K-slab (streamed)
            pl.BlockSpec((1, H_pad), lambda i, k: (0, 0)),             # b_bottom (resident)
            pl.BlockSpec((NH, H_pad, H_pad), lambda i, k: (0, 0, 0)),  # fc_1..fc_4 (resident)
            pl.BlockSpec((NH, 1, H_pad), lambda i, k: (0, 0, 0)),      # fc biases
            pl.BlockSpec((H_pad, C_pad), lambda i, k: (0, 0)),         # fc_final
            pl.BlockSpec((1, C_pad), lambda i, k: (0, 0)),             # fc_final bias
        ],
        out_specs=pl.BlockSpec((TB, C_pad), lambda i, k: (i, 0)),
        scratch_shapes=[pltpu.VMEM((TB, H_pad), jnp.float32)],
        compiler_params=pltpu.CompilerParams(
            dimension_semantics=("parallel", "arbitrary"),
            vmem_limit_bytes=vmem_limit),
        cost_estimate=pl.CostEstimate(flops=int(flops), transcendentals=0,
                                      bytes_accessed=int(bytes_accessed)),
    )(x_in, w0, b0, wst, bst, wf, bf)

    return out_pad[:B, :C]


def _reference_forward(x, params, *, num_layer=5):
    """Pure-JAX reference replicating the unfused/unfolded forward semantics."""
    B = x.shape[0]
    h = x.reshape(B, -1).astype(jnp.float32)
    h = h @ params['w_bottom'] + params['b_bottom']
    for i in range(max(0, min(num_layer - 1, 4))):
        h = h * params['bn_scale_stack'][i] + params['bn_shift_stack'][i]
        h = jnp.maximum(h, 0.0)
        h = h @ params['w_stack'][i] + params['b_stack'][i]
    h = h * params['bn_scale_final'] + params['bn_shift_final']
    h = jnp.maximum(h, 0.0)
    return h @ params['w_final'] + params['b_final']


def make_params(key, d_in, size_bottom_out, num_classes):
    """Deterministic parameter init mirroring the module's __init__ (eval-mode BN)."""
    H = size_bottom_out
    eps = 1e-5
    ks = jax.random.split(key, 8)

    # bottom-model stand-in (dataset-specific model not available)
    w_bottom = jax.random.normal(ks[0], (d_in, H), jnp.float32) / jnp.sqrt(d_in)
    b_bottom = jax.random.uniform(ks[1], (1, H), jnp.float32,
                                  -1.0 / jnp.sqrt(d_in), 1.0 / jnp.sqrt(d_in))

    # fc_1..fc_4: weights_init_ones -> weight = ones; bias = default uniform
    bound = 1.0 / jnp.sqrt(H)
    w_stack = jnp.ones((4, H, H), jnp.float32)
    b_stack = jax.random.uniform(ks[2], (4, 1, H), jnp.float32, -bound, bound)

    # BatchNorm1d (eval mode): gamma=1, beta=0, running_mean=0, running_var=1
    bn_scale = jnp.full((H,), 1.0 / jnp.sqrt(1.0 + eps), jnp.float32)
    bn_shift = jnp.zeros((H,), jnp.float32)
    bn_scale_stack = jnp.broadcast_to(bn_scale, (4, 1, H)).astype(jnp.float32)
    bn_shift_stack = jnp.broadcast_to(bn_shift, (4, 1, H)).astype(jnp.float32)
    bn_scale_final = bn_scale.reshape(1, H)
    bn_shift_final = bn_shift.reshape(1, H)

    # fc_final: weight = ones (weights_init_ones), bias = default uniform
    w_final = jnp.ones((H, num_classes), jnp.float32)
    b_final = jax.random.uniform(ks[3], (1, num_classes), jnp.float32, -bound, bound)

    return dict(w_bottom=w_bottom, b_bottom=b_bottom,
                w_stack=w_stack, b_stack=b_stack,
                bn_scale_stack=bn_scale_stack, bn_shift_stack=bn_shift_stack,
                bn_scale_final=bn_scale_final, bn_shift_final=bn_shift_final,
                w_final=w_final, b_final=b_final)


if __name__ == "__main__":
    key = jax.random.PRNGKey(0)
    k_x, k_p = jax.random.split(key)

    # small shapes: batch=2, NCHW input (2, 4, 16, 16), size_bottom_out=32, classes=10
    B, Cc, Hs, Ws = 2, 4, 16, 16
    size_bottom_out, num_classes, num_layer = 32, 10, 5

    x = jax.random.normal(k_x, (B, Cc, Hs, Ws), jnp.float32)
    params = make_params(k_p, Cc * Hs * Ws, size_bottom_out, num_classes)

    ref = _reference_forward(x, params, num_layer=num_layer)

    # f32 path: exact verification against the pure-JAX reference
    out_f32 = bottom_model_plus_forward(x, params, num_layer=num_layer,
                                        compute_dtype=jnp.float32)
    out_f32 = jax.block_until_ready(out_f32)
    assert out_f32.shape == (B, num_classes)
    assert jnp.allclose(out_f32, ref, rtol=1e-5, atol=1e-3), "f32 mismatch vs JAX reference"

    # default bf16 path (MXU operands bf16, f32 accumulation): tolerance check vs f32 ref
    out_bf16 = bottom_model_plus_forward(x, params, num_layer=num_layer)
    out_bf16 = jax.block_until_ready(out_bf16)
    assert out_bf16.shape == (B, num_classes)
    assert bool(jnp.isfinite(out_bf16).all())
    rel_err = float(jnp.max(jnp.abs(out_bf16 - ref) / (jnp.abs(ref) + 1e-3)))
    assert rel_err < 0.08, f"bf16 relative error too large: {rel_err}"

    print("KERNEL_OK")
</pallas_src>

<mosaic_0001>
module attributes {stable_mosaic.version = 11 : i64} {
  func.func @_fused_mlp_kernel(%arg0: i32, %arg1: i32, %arg2: memref<8x1024xf32, #tpu.memory_space<vmem>>, %arg3: memref<1024x128xf32, #tpu.memory_space<vmem>>, %arg4: memref<1x128xf32, #tpu.memory_space<vmem>>, %arg5: memref<4x128x128xf32, #tpu.memory_space<vmem>>, %arg6: memref<4x1x128xf32, #tpu.memory_space<vmem>>, %arg7: memref<128x128xf32, #tpu.memory_space<vmem>>, %arg8: memref<1x128xf32, #tpu.memory_space<vmem>>, %arg9: memref<8x128xf32, #tpu.memory_space<vmem>>, %arg10: memref<8x128xf32, #tpu.memory_space<vmem>>) attributes {dimension_semantics = [#tpu.dimension_semantics<parallel>, #tpu.dimension_semantics<arbitrary>], iteration_bounds = array<i64: 1, 1>, scalar_prefetch = 0 : i64, scratch_operands = 1 : i64, tpu.core_type = #tpu.core_type<tc>, window_params = [{transform_indices = @transform_0, window_bounds = array<i64: 8, 1024>}, {transform_indices = @transform_1, window_bounds = array<i64: 1024, 128>}, {pipeline_mode = #tpu.pipeline_mode<synchronous>, transform_indices = @transform_2, window_bounds = array<i64: 1, 128>}, {pipeline_mode = #tpu.pipeline_mode<synchronous>, transform_indices = @transform_3, window_bounds = array<i64: 4, 128, 128>}, {pipeline_mode = #tpu.pipeline_mode<synchronous>, transform_indices = @transform_4, window_bounds = array<i64: 4, 1, 128>}, {pipeline_mode = #tpu.pipeline_mode<synchronous>, transform_indices = @transform_5, window_bounds = array<i64: 128, 128>}, {pipeline_mode = #tpu.pipeline_mode<synchronous>, transform_indices = @transform_6, window_bounds = array<i64: 1, 128>}, {transform_indices = @transform_7, window_bounds = array<i64: 8, 128>}]} {
    %c0_i32 = arith.constant 0 : i32
    %0 = arith.cmpi eq, %arg1, %c0_i32 : i32
    %1 = arith.extui %0 : i1 to i32
    %c0_i32_0 = arith.constant 0 : i32
    %2 = arith.cmpi ne, %1, %c0_i32_0 : i32
    scf.if %2 {
      %cst_10 = arith.constant 0.000000e+00 : f32
      %12 = vector.broadcast %cst_10 : f32 to vector<8x128xf32>
      %c0_11 = arith.constant 0 : index
      %c0_12 = arith.constant 0 : index
      %13 = vector.load %arg10[%c0_11, %c0_12] : memref<8x128xf32, #tpu.memory_space<vmem>>, vector<8x128xf32>
      tpu.vector_store %arg10[%c0_11, %c0_12], %12 {strides = array<i32>} : memref<8x128xf32, #tpu.memory_space<vmem>>, vector<8x128xf32>,
    } else {
    }
    %c0 = arith.constant 0 : index
    %c0_1 = arith.constant 0 : index
    %3 = vector.load %arg10[%c0, %c0_1] : memref<8x128xf32, #tpu.memory_space<vmem>>, vector<8x128xf32>
    %c0_2 = arith.constant 0 : index
    %c0_3 = arith.constant 0 : index
    %4 = vector.load %arg2[%c0_2, %c0_3] : memref<8x1024xf32, #tpu.memory_space<vmem>>, vector<8x1024xf32>
    %c0_4 = arith.constant 0 : index
    %c0_5 = arith.constant 0 : index
    %5 = vector.load %arg3[%c0_4, %c0_5] : memref<1024x128xf32, #tpu.memory_space<vmem>>, vector<1024x128xf32>
    %cst = arith.constant dense<0.000000e+00> : vector<8x128xf32>
    %6 = tpu.matmul %4, %5, %cst {dimension_numbers = #tpu.dot_dimension_numbers<[1], [0], [0], [1], [0, 0, 1, 1], [], []>} : vector<8x1024xf32>, vector<1024x128xf32>, vector<8x128xf32> -> vector<8x128xf32>
    %7 = arith.addf %3, %6 : vector<8x128xf32>
    %c0_6 = arith.constant 0 : index
    %c0_7 = arith.constant 0 : index
    %8 = vector.load %arg10[%c0_6, %c0_7] : memref<8x128xf32, #tpu.memory_space<vmem>>, vector<8x128xf32>
    tpu.vector_store %arg10[%c0_6, %c0_7], %7 {strides = array<i32>} : memref<8x128xf32, #tpu.memory_space<vmem>>, vector<8x128xf32>,
    %c0_i32_8 = arith.constant 0 : i32
    %9 = arith.cmpi eq, %arg1, %c0_i32_8 : i32
    %10 = arith.extui %9 : i1 to i32
    %c0_i32_9 = arith.constant 0 : i32
    %11 = arith.cmpi ne, %10, %c0_i32_9 : i32
    scf.if %11 {
      %c0_10 = arith.constant 0 : index
      %c0_11 = arith.constant 0 : index
      %12 = vector.load %arg10[%c0_10, %c0_11] : memref<8x128xf32, #tpu.memory_space<vmem>>, vector<8x128xf32>
      %c0_12 = arith.constant 0 : index
      %c0_13 = arith.constant 0 : index
      %13 = vector.load %arg4[%c0_12, %c0_13] : memref<1x128xf32, #tpu.memory_space<vmem>>, vector<1x128xf32>
      %14 = vector.broadcast %13 : vector<1x128xf32> to vector<8x128xf32>
      %15 = arith.addf %12, %14 : vector<8x128xf32>
      %cst_14 = arith.constant 0.000000e+00 : f32
      %16 = vector.broadcast %cst_14 : f32 to vector<8x128xf32>
      %17 = arith.maximumf %15, %16 : vector<8x128xf32>
      %c0_15 = arith.constant 0 : index
      %c0_16 = arith.constant 0 : index
      %c0_17 = arith.constant 0 : index
      %18 = vector.load %arg5[%c0_15, %c0_16, %c0_17] : memref<4x128x128xf32, #tpu.memory_space<vmem>>, vector<1x128x128xf32>
      %19 = vector.shape_cast %18 : vector<1x128x128xf32> to vector<128x128xf32>
      %cst_18 = arith.constant dense<0.000000e+00> : vector<8x128xf32>
      %20 = tpu.matmul %17, %19, %cst_18 {dimension_numbers = #tpu.dot_dimension_numbers<[1], [0], [0], [1], [0, 0, 1, 1], [], []>} : vector<8x128xf32>, vector<128x128xf32>, vector<8x128xf32> -> vector<8x128xf32>
      %c0_19 = arith.constant 0 : index
      %c0_20 = arith.constant 0 : index
      %c0_21 = arith.constant 0 : index
      %21 = vector.load %arg6[%c0_19, %c0_20, %c0_21] : memref<4x1x128xf32, #tpu.memory_space<vmem>>, vector<1x1x128xf32>
      %22 = vector.shape_cast %21 : vector<1x1x128xf32> to vector<1x128xf32>
      %23 = vector.broadcast %22 : vector<1x128xf32> to vector<8x128xf32>
      %24 = arith.addf %20, %23 : vector<8x128xf32>
      %cst_22 = arith.constant 0.000000e+00 : f32
      %25 = vector.broadcast %cst_22 : f32 to vector<8x128xf32>
      %26 = arith.maximumf %24, %25 : vector<8x128xf32>
      %c1 = arith.constant 1 : index
      %c0_23 = arith.constant 0 : index
      %c0_24 = arith.constant 0 : index
      %27 = vector.load %arg5[%c1, %c0_23, %c0_24] : memref<4x128x128xf32, #tpu.memory_space<vmem>>, vector<1x128x128xf32>
      %28 = vector.shape_cast %27 : vector<1x128x128xf32> to vector<128x128xf32>
      %cst_25 = arith.constant dense<0.000000e+00> : vector<8x128xf32>
      %29 = tpu.matmul %26, %28, %cst_25 {dimension_numbers = #tpu.dot_dimension_numbers<[1], [0], [0], [1], [0, 0, 1, 1], [], []>} : vector<8x128xf32>, vector<128x128xf32>, vector<8x128xf32> -> vector<8x128xf32>
      %c1_26 = arith.constant 1 : index
      %c0_27 = arith.constant 0 : index
      %c0_28 = arith.constant 0 : index
      %30 = vector.load %arg6[%c1_26, %c0_27, %c0_28] : memref<4x1x128xf32, #tpu.memory_space<vmem>>, vector<1x1x128xf32>
      %31 = vector.shape_cast %30 : vector<1x1x128xf32> to vector<1x128xf32>
      %32 = vector.broadcast %31 : vector<1x128xf32> to vector<8x128xf32>
      %33 = arith.addf %29, %32 : vector<8x128xf32>
      %cst_29 = arith.constant 0.000000e+00 : f32
      %34 = vector.broadcast %cst_29 : f32 to vector<8x128xf32>
      %35 = arith.maximumf %33, %34 : vector<8x128xf32>
      %c2 = arith.constant 2 : index
      %c0_30 = arith.constant 0 : index
      %c0_31 = arith.constant 0 : index
      %36 = vector.load %arg5[%c2, %c0_30, %c0_31] : memref<4x128x128xf32, #tpu.memory_space<vmem>>, vector<1x128x128xf32>
      %37 = vector.shape_cast %36 : vector<1x128x128xf32> to vector<128x128xf32>
      %cst_32 = arith.constant dense<0.000000e+00> : vector<8x128xf32>
      %38 = tpu.matmul %35, %37, %cst_32 {dimension_numbers = #tpu.dot_dimension_numbers<[1], [0], [0], [1], [0, 0, 1, 1], [], []>} : vector<8x128xf32>, vector<128x128xf32>, vector<8x128xf32> -> vector<8x128xf32>
      %c2_33 = arith.constant 2 : index
      %c0_34 = arith.constant 0 : index
      %c0_35 = arith.constant 0 : index
      %39 = vector.load %arg6[%c2_33, %c0_34, %c0_35] : memref<4x1x128xf32, #tpu.memory_space<vmem>>, vector<1x1x128xf32>
      %40 = vector.shape_cast %39 : vector<1x1x128xf32> to vector<1x128xf32>
      %41 = vector.broadcast %40 : vector<1x128xf32> to vector<8x128xf32>
      %42 = arith.addf %38, %41 : vector<8x128xf32>
      %cst_36 = arith.constant 0.000000e+00 : f32
      %43 = vector.broadcast %cst_36 : f32 to vector<8x128xf32>
      %44 = arith.maximumf %42, %43 : vector<8x128xf32>
      %c3 = arith.constant 3 : index
      %c0_37 = arith.constant 0 : index
      %c0_38 = arith.constant 0 : index
      %45 = vector.load %arg5[%c3, %c0_37, %c0_38] : memref<4x128x128xf32, #tpu.memory_space<vmem>>, vector<1x128x128xf32>
      %46 = vector.shape_cast %45 : vector<1x128x128xf32> to vector<128x128xf32>
      %cst_39 = arith.constant dense<0.000000e+00> : vector<8x128xf32>
      %47 = tpu.matmul %44, %46, %cst_39 {dimension_numbers = #tpu.dot_dimension_numbers<[1], [0], [0], [1], [0, 0, 1, 1], [], []>} : vector<8x128xf32>, vector<128x128xf32>, vector<8x128xf32> -> vector<8x128xf32>
      %c3_40 = arith.constant 3 : index
      %c0_41 = arith.constant 0 : index
      %c0_42 = arith.constant 0 : index
      %48 = vector.load %arg6[%c3_40, %c0_41, %c0_42] : memref<4x1x128xf32, #tpu.memory_space<vmem>>, vector<1x1x128xf32>
      %49 = vector.shape_cast %48 : vector<1x1x128xf32> to vector<1x128xf32>
      %50 = vector.broadcast %49 : vector<1x128xf32> to vector<8x128xf32>
      %51 = arith.addf %47, %50 : vector<8x128xf32>
      %cst_43 = arith.constant 0.000000e+00 : f32
      %52 = vector.broadcast %cst_43 : f32 to vector<8x128xf32>
      %53 = arith.maximumf %51, %52 : vector<8x128xf32>
      %c0_44 = arith.constant 0 : index
      %c0_45 = arith.constant 0 : index
      %54 = vector.load %arg7[%c0_44, %c0_45] : memref<128x128xf32, #tpu.memory_space<vmem>>, vector<128x128xf32>
      %cst_46 = arith.constant dense<0.000000e+00> : vector<8x128xf32>
      %55 = tpu.matmul %53, %54, %cst_46 {dimension_numbers = #tpu.dot_dimension_numbers<[1], [0], [0], [1], [0, 0, 1, 1], [], []>} : vector<8x128xf32>, vector<128x128xf32>, vector<8x128xf32> -> vector<8x128xf32>
      %c0_47 = arith.constant 0 : index
      %c0_48 = arith.constant 0 : index
      %56 = vector.load %arg8[%c0_47, %c0_48] : memref<1x128xf32, #tpu.memory_space<vmem>>, vector<1x128xf32>
      %57 = vector.broadcast %56 : vector<1x128xf32> to vector<8x128xf32>
      %58 = arith.addf %55, %57 : vector<8x128xf32>
      %c0_49 = arith.constant 0 : index
      %c0_50 = arith.constant 0 : index
      %59 = vector.load %arg9[%c0_49, %c0_50] : memref<8x128xf32, #tpu.memory_space<vmem>>, vector<8x128xf32>
      tpu.vector_store %arg9[%c0_49, %c0_50], %58 {strides = array<i32>} : memref<8x128xf32, #tpu.memory_space<vmem>>, vector<8x128xf32>,
    } else {
    }
    return
  }
  func.func @transform_0(%arg0: i32, %arg1: i32) -> (i32, i32) {
    %c0_i32 = arith.constant 0 : i32
    return %arg0, %arg1 : i32, i32
  }
  func.func @transform_1(%arg0: i32, %arg1: i32) -> (i32, i32) {
    %c0_i32 = arith.constant 0 : i32
    %c0_i32_0 = arith.constant 0 : i32
    return %arg1, %c0_i32 : i32, i32
  }
  func.func @transform_2(%arg0: i32, %arg1: i32) -> (i32, i32) {
    %c0_i32 = arith.constant 0 : i32
    %c0_i32_0 = arith.constant 0 : i32
    %c0_i32_1 = arith.constant 0 : i32
    return %c0_i32, %c0_i32_0 : i32, i32
  }
  func.func @transform_3(%arg0: i32, %arg1: i32) -> (i32, i32, i32) {
    %c0_i32 = arith.constant 0 : i32
    %c0_i32_0 = arith.constant 0 : i32
    %c0_i32_1 = arith.constant 0 : i32
    %c0_i32_2 = arith.constant 0 : i32
    return %c0_i32, %c0_i32_0, %c0_i32_1 : i32, i32, i32
  }
  func.func @transform_4(%arg0: i32, %arg1: i32) -> (i32, i32, i32) {
    %c0_i32 = arith.constant 0 : i32
    %c0_i32_0 = arith.constant 0 : i32
    %c0_i32_1 = arith.constant 0 : i32
    %c0_i32_2 = arith.constant 0 : i32
    return %c0_i32, %c0_i32_0, %c0_i32_1 : i32, i32, i32
  }
  func.func @transform_5(%arg0: i32, %arg1: i32) -> (i32, i32) {
    %c0_i32 = arith.constant 0 : i32
    %c0_i32_0 = arith.constant 0 : i32
    %c0_i32_1 = arith.constant 0 : i32
    return %c0_i32, %c0_i32_0 : i32, i32
  }
  func.func @transform_6(%arg0: i32, %arg1: i32) -> (i32, i32) {
    %c0_i32 = arith.constant 0 : i32
    %c0_i32_0 = arith.constant 0 : i32
    %c0_i32_1 = arith.constant 0 : i32
    return %c0_i32, %c0_i32_0 : i32, i32
  }
  func.func @transform_7(%arg0: i32, %arg1: i32) -> (i32, i32) {
    %c0_i32 = arith.constant 0 : i32
    %c0_i32_0 = arith.constant 0 : i32
    return %arg0, %c0_i32 : i32, i32
  }
}

</mosaic_0001>

<llo_original>
// kernel: tpu_custom_call.1
$region0: #{tpu_custom_call.1}
  #allocation0 [shape = 'u32[]', space=smem, size = 0x4, offset = 0x4, fixed_abs, tag = 'smem constant byte address 0x4 - core index']
  #allocation1 [shape = 'u32[144,128]{1,0:T(1,128)}', space=vmem, size = 0x12000, scoped, tag = 'internal scratch']
  #allocation2 [shape = 'f32[8,128]{1,0:T(8,128)}', space=vmem, size = 0x1000, scoped, tag = 'scratch operand']
  %s0 = inlined_call_operand.hbm [shape: f32[8,1024], index: 0, kind: input, shape index: {}]
  %s1 = inlined_call_operand.hbm [shape: f32[1024,128], index: 1, kind: input, shape index: {}]
  %s2 = inlined_call_operand.vmem [shape: f32[1,128], index: 2, kind: input, shape index: {}]
  %s3 = inlined_call_operand.hbm [shape: f32[4,128,128], index: 3, kind: input, shape index: {}]
  %s4 = inlined_call_operand.vmem [shape: f32[4,1,128], index: 4, kind: input, shape index: {}]
  %s5 = inlined_call_operand.hbm [shape: f32[128,128], index: 5, kind: input, shape index: {}]
  %s6 = inlined_call_operand.vmem [shape: f32[1,128], index: 6, kind: input, shape index: {}]
  %s7 = inlined_call_operand.hbm [shape: f32[8,128], index: 7, kind: output, shape index: {}]
  %s8 = sld [smem:[#allocation0]]
  $region62: #{tpu_custom_call.1} parent=0
    _
  %s10 = ssub.s32 1, %s8
  %s11 = scalar_select 0, %s10, %s8
  $region1: #{tpu_custom_call.1} parent=0
    #allocation3 [shape = 'u8[32768]{0}', space=vmem, size = 0x8000, scoped, tag = 'input window, operand 0, single buffered']
    #allocation4 [shape = 's32[1]{0}', space=sflag, size = 0x4, scoped, tag = 'scoped memory for tpu_custom_call.1']
    #allocation5 [shape = 's32[1]{0}', space=sflag, size = 0x4, scoped, tag = 'scoped memory for tpu_custom_call.1']
    #allocation6 [shape = 'u8[524288]{0}', space=vmem, size = 0x80000, scoped, tag = 'input window, operand 1, single buffered']
    #allocation7 [shape = 's32[1]{0}', space=sflag, size = 0x4, scoped, tag = 'scoped memory for tpu_custom_call.1']
    #allocation8 [shape = 'u8[262144]{0}', space=vmem, size = 0x40000, scoped, tag = 'input window, operand 3, single buffered']
    #allocation9 [shape = 'u8[65536]{0}', space=vmem, size = 0x10000, scoped, tag = 'input window, operand 5, single buffered']
    #allocation10 [shape = 's32[1]{0}', space=sflag, size = 0x4, scoped, tag = 'scoped memory for tpu_custom_call.1']
    #allocation11 [shape = 'u8[4096]{0}', space=vmem, size = 0x1000, scoped, tag = 'output window, operand 0, single buffered']
    %12 = vsyncpa [#allocation4], 0
    %13 = vsyncpa [#allocation7], 0
    %14 = vsyncpa [#allocation10], 0
    %15 = vsyncpa [#allocation5], 0
    // Predicated region
    $region2: #{tpu_custom_call.1} parent=1 // pred_check
      _
    $region3: #{tpu_custom_call.1} parent=1 // pred_check_branch
      %17 = sbr.rel (0) target = $region5
    $region4: #{tpu_custom_call.1} parent=1 // pred_region
      %s19 = ssub.s32 1024, 1024
      %20 = vsyncadd [#allocation4], %s19
      %s22 = sshll.u32 [#allocation3], 4
      %s23 = int_to_ptr.vmem [resolvable:$true] %s22
      %25 = dma.hbm_to_vmem [thread:$0]  %s0, 1024, %s23, [#allocation4]
    $region5: #{tpu_custom_call.1} parent=1 // pred_fallthru
      _
    // Predicated region
    $region6: #{tpu_custom_call.1} parent=1 // pred_check
      _
    $region7: #{tpu_custom_call.1} parent=1 // pred_check_branch
      %27 = sbr.rel (0) target = $region9
    $region8: #{tpu_custom_call.1} parent=1 // pred_region
      %s29 = ssub.s32 16384, 16384
      %30 = vsyncadd [#allocation7], %s29
      %s31 = sshll.u32 [#allocation6], 4
      %s32 = int_to_ptr.vmem [resolvable:$true] %s31
      %37 = dma.hbm_to_vmem [thread:$0]  %s1, 16384, %s32, [#allocation7], 128, 128, 8
    $region9: #{tpu_custom_call.1} parent=1 // pred_fallthru
      _
    // Predicated region
    $region10: #{tpu_custom_call.1} parent=1 // pred_check
      _
    $region11: #{tpu_custom_call.1} parent=1 // pred_check_branch
      %39 = sbr.rel (0) target = $region13
    $region12: #{tpu_custom_call.1} parent=1 // pred_region
      _
    $region13: #{tpu_custom_call.1} parent=1 // pred_fallthru
      _
    // Predicated region
    $region14: #{tpu_custom_call.1} parent=1 // pred_check
      _
    $region15: #{tpu_custom_call.1} parent=1 // pred_check_branch
      %41 = sbr.rel (0) target = $region17
    $region16: #{tpu_custom_call.1} parent=1 // pred_region
      %s43 = ssub.s32 8192, 8192
      %44 = vsyncadd [#allocation7], %s43
      %s45 = sshll.u32 [#allocation8], 4
      %s46 = int_to_ptr.vmem [resolvable:$true] %s45
      %51 = dma.hbm_to_vmem [thread:$0]  %s3, 8192, %s46, [#allocation7], 128, 128, 8
    $region17: #{tpu_custom_call.1} parent=1 // pred_fallthru
      _
    // Predicated region
    $region18: #{tpu_custom_call.1} parent=1 // pred_check
      _
    $region19: #{tpu_custom_call.1} parent=1 // pred_check_branch
      %53 = sbr.rel (0) target = $region21
    $region20: #{tpu_custom_call.1} parent=1 // pred_region
      _
    $region21: #{tpu_custom_call.1} parent=1 // pred_fallthru
      _
    // Predicated region
    $region22: #{tpu_custom_call.1} parent=1 // pred_check
      _
    $region23: #{tpu_custom_call.1} parent=1 // pred_check_branch
      %55 = sbr.rel (0) target = $region25
    $region24: #{tpu_custom_call.1} parent=1 // pred_region
      %s57 = ssub.s32 2048, 2048
      %58 = vsyncadd [#allocation10], %s57
      %s59 = sshll.u32 [#allocation9], 4
      %s60 = int_to_ptr.vmem [resolvable:$true] %s59
      %65 = dma.hbm_to_vmem [thread:$0]  %s5, 2048, %s60, [#allocation10], 128, 128, 8
    $region25: #{tpu_custom_call.1} parent=1 // pred_fallthru
      _
    // Predicated region
    $region26: #{tpu_custom_call.1} parent=1 // pred_check
      _
    $region27: #{tpu_custom_call.1} parent=1 // pred_check_branch
      %67 = sbr.rel (0) target = $region29
    $region28: #{tpu_custom_call.1} parent=1 // pred_region
      _
    $region29: #{tpu_custom_call.1} parent=1 // pred_fallthru
      _
    // Predicated region
    $region30: #{tpu_custom_call.1} parent=1 // pred_check
      _
    $region31: #{tpu_custom_call.1} parent=1 // pred_check_branch
      %69 = sbr.rel (0) target = $region33
    $region32: #{tpu_custom_call.1} parent=1 // pred_region
      %70 = dma.done [#allocation4], 1024
    $region33: #{tpu_custom_call.1} parent=1 // pred_fallthru
      _
    // Predicated region
    $region34: #{tpu_custom_call.1} parent=1 // pred_check
      _
    $region35: #{tpu_custom_call.1} parent=1 // pred_check_branch
      %72 = sbr.rel (0) target = $region37
    $region36: #{tpu_custom_call.1} parent=1 // pred_region
      %73 = dma.done [#allocation7], 16384
    $region37: #{tpu_custom_call.1} parent=1 // pred_fallthru
      _
    // Predicated region
    $region38: #{tpu_custom_call.1} parent=1 // pred_check
      _
    $region39: #{tpu_custom_call.1} parent=1 // pred_check_branch
      %75 = sbr.rel (0) target = $region41
    $region40: #{tpu_custom_call.1} parent=1 // pred_region
      %76 = dma.done [#allocation7], 8192
    $region41: #{tpu_custom_call.1} parent=1 // pred_fallthru
      _
    // Predicated region
    $region42: #{tpu_custom_call.1} parent=1 // pred_check
      _
    $region43: #{tpu_custom_call.1} parent=1 // pred_check_branch
      %78 = sbr.rel (0) target = $region45
    $region44: #{tpu_custom_call.1} parent=1 // pred_region
      %79 = dma.done [#allocation10], 2048
    $region45: #{tpu_custom_call.1} parent=1 // pred_fallthru
      _
    %p80 = scmp.eq.s32.totalorder 0, 0
    // Predicated region
    $region46: #{tpu_custom_call.1} parent=1 // pred_check
      %p81 = pneg %p80
    $region47: #{tpu_custom_call.1} parent=1 // pred_check_branch
      %83 = sbr.rel (%p81) target = $region49
    $region48: #{tpu_custom_call.1} parent=1 // pred_region
      %84 = vst [vmem:[#allocation2] sm:$0xff] 0.0
    $region49: #{tpu_custom_call.1} parent=1 // pred_fallthru
      _
    %v85 = vld [vmem:[#allocation2] sm:$0xff]
    %v86 = vld [vmem:[#allocation3] sm:$0xff]
    %v87 = vld [vmem:[#allocation3 + $0x8] sm:$0xff]
    %v88 = vld [vmem:[#allocation3 + $0x10] sm:$0xff]
    %v89 = vld [vmem:[#allocation3 + $0x18] sm:$0xff]
    %v90 = vld [vmem:[#allocation3 + $0x20] sm:$0xff]
    %v91 = vld [vmem:[#allocation3 + $0x28] sm:$0xff]
    %v92 = vld [vmem:[#allocation3 + $0x30] sm:$0xff]
    %v93 = vld [vmem:[#allocation3 + $0x38] sm:$0xff]
    %v94 = vld [vmem:[#allocation6] sm:$0xff]
    %v95 = vld [vmem:[#allocation6 + $0x8] sm:$0xff]
    %v96 = vld [vmem:[#allocation6 + $0x10] sm:$0xff]
    %v97 = vld [vmem:[#allocation6 + $0x18] sm:$0xff]
    %v98 = vld [vmem:[#allocation6 + $0x20] sm:$0xff]
    %v99 = vld [vmem:[#allocation6 + $0x28] sm:$0xff]
    %v100 = vld [vmem:[#allocation6 + $0x30] sm:$0xff]
    %v101 = vld [vmem:[#allocation6 + $0x38] sm:$0xff]
    %v102 = vld [vmem:[#allocation6 + $0x40] sm:$0xff]
    %v103 = vld [vmem:[#allocation6 + $0x48] sm:$0xff]
    %v104 = vld [vmem:[#allocation6 + $0x50] sm:$0xff]
    %v105 = vld [vmem:[#allocation6 + $0x58] sm:$0xff]
    %v106 = vld [vmem:[#allocation6 + $0x60] sm:$0xff]
    %v107 = vld [vmem:[#allocation6 + $0x68] sm:$0xff]
    %v108 = vld [vmem:[#allocation6 + $0x70] sm:$0xff]
    %v109 = vld [vmem:[#allocation6 + $0x78] sm:$0xff]
    %v110 = vld [vmem:[#allocation6 + $0x80] sm:$0xff]
    %v111 = vld [vmem:[#allocation6 + $0x88] sm:$0xff]
    %v112 = vld [vmem:[#allocation6 + $0x90] sm:$0xff]
    %v113 = vld [vmem:[#allocation6 + $0x98] sm:$0xff]
    %v114 = vld [vmem:[#allocation6 + $0xa0] sm:$0xff]
    %v115 = vld [vmem:[#allocation6 + $0xa8] sm:$0xff]
    %v116 = vld [vmem:[#allocation6 + $0xb0] sm:$0xff]
    %v117 = vld [vmem:[#allocation6 + $0xb8] sm:$0xff]
    %v118 = vld [vmem:[#allocation6 + $0xc0] sm:$0xff]
    %v119 = vld [vmem:[#allocation6 + $0xc8] sm:$0xff]
    %v120 = vld [vmem:[#allocation6 + $0xd0] sm:$0xff]
    %v121 = vld [vmem:[#allocation6 + $0xd8] sm:$0xff]
    %v122 = vld [vmem:[#allocation6 + $0xe0] sm:$0xff]
    %v123 = vld [vmem:[#allocation6 + $0xe8] sm:$0xff]
    %v124 = vld [vmem:[#allocation6 + $0xf0] sm:$0xff]
    %v125 = vld [vmem:[#allocation6 + $0xf8] sm:$0xff]
    %v126 = vld [vmem:[#allocation6 + $0x100] sm:$0xff]
    %v127 = vld [vmem:[#allocation6 + $0x108] sm:$0xff]
    %v128 = vld [vmem:[#allocation6 + $0x110] sm:$0xff]
    %v129 = vld [vmem:[#allocation6 + $0x118] sm:$0xff]
    %v130 = vld [vmem:[#allocation6 + $0x120] sm:$0xff]
    %v131 = vld [vmem:[#allocation6 + $0x128] sm:$0xff]
    %v132 = vld [vmem:[#allocation6 + $0x130] sm:$0xff]
    %v133 = vld [vmem:[#allocation6 + $0x138] sm:$0xff]
    %v134 = vld [vmem:[#allocation6 + $0x140] sm:$0xff]
    %v135 = vld [vmem:[#allocation6 + $0x148] sm:$0xff]
    %v136 = vld [vmem:[#allocation6 + $0x150] sm:$0xff]
    %v137 = vld [vmem:[#allocation6 + $0x158] sm:$0xff]
    %v138 = vld [vmem:[#allocation6 + $0x160] sm:$0xff]
    %v139 = vld [vmem:[#allocation6 + $0x168] sm:$0xff]
    %v140 = vld [vmem:[#allocation6 + $0x170] sm:$0xff]
    %v141 = vld [vmem:[#allocation6 + $0x178] sm:$0xff]
    %v142 = vld [vmem:[#allocation6 + $0x180] sm:$0xff]
    %v143 = vld [vmem:[#allocation6 + $0x188] sm:$0xff]
    %v144 = vld [vmem:[#allocation6 + $0x190] sm:$0xff]
    %v145 = vld [vmem:[#allocation6 + $0x198] sm:$0xff]
    %v146 = vld [vmem:[#allocation6 + $0x1a0] sm:$0xff]
    %v147 = vld [vmem:[#allocation6 + $0x1a8] sm:$0xff]
    %v148 = vld [vmem:[#allocation6 + $0x1b0] sm:$0xff]
    %v149 = vld [vmem:[#allocation6 + $0x1b8] sm:$0xff]
    %v150 = vld [vmem:[#allocation6 + $0x1c0] sm:$0xff]
    %v151 = vld [vmem:[#allocation6 + $0x1c8] sm:$0xff]
    %v152 = vld [vmem:[#allocation6 + $0x1d0] sm:$0xff]
    %v153 = vld [vmem:[#allocation6 + $0x1d8] sm:$0xff]
    %v154 = vld [vmem:[#allocation6 + $0x1e0] sm:$0xff]
    %v155 = vld [vmem:[#allocation6 + $0x1e8] sm:$0xff]
    %v156 = vld [vmem:[#allocation6 + $0x1f0] sm:$0xff]
    %v157 = vld [vmem:[#allocation6 + $0x1f8] sm:$0xff]
    %v158 = vld [vmem:[#allocation6 + $0x200] sm:$0xff]
    %v159 = vld [vmem:[#allocation6 + $0x208] sm:$0xff]
    %v160 = vld [vmem:[#allocation6 + $0x210] sm:$0xff]
    %v161 = vld [vmem:[#allocation6 + $0x218] sm:$0xff]
    %v162 = vld [vmem:[#allocation6 + $0x220] sm:$0xff]
    %v163 = vld [vmem:[#allocation6 + $0x228] sm:$0xff]
    %v164 = vld [vmem:[#allocation6 + $0x230] sm:$0xff]
    %v165 = vld [vmem:[#allocation6 + $0x238] sm:$0xff]
    %v166 = vld [vmem:[#allocation6 + $0x240] sm:$0xff]
    %v167 = vld [vmem:[#allocation6 + $0x248] sm:$0xff]
    %v168 = vld [vmem:[#allocation6 + $0x250] sm:$0xff]
    %v169 = vld [vmem:[#allocation6 + $0x258] sm:$0xff]
    %v170 = vld [vmem:[#allocation6 + $0x260] sm:$0xff]
    %v171 = vld [vmem:[#allocation6 + $0x268] sm:$0xff]
    %v172 = vld [vmem:[#allocation6 + $0x270] sm:$0xff]
    %v173 = vld [vmem:[#allocation6 + $0x278] sm:$0xff]
    %v174 = vld [vmem:[#allocation6 + $0x280] sm:$0xff]
    %v175 = vld [vmem:[#allocation6 + $0x288] sm:$0xff]
    %v176 = vld [vmem:[#allocation6 + $0x290] sm:$0xff]
    %v177 = vld [vmem:[#allocation6 + $0x298] sm:$0xff]
    %v178 = vld [vmem:[#allocation6 + $0x2a0] sm:$0xff]
    %v179 = vld [vmem:[#allocation6 + $0x2a8] sm:$0xff]
    %v180 = vld [vmem:[#allocation6 + $0x2b0] sm:$0xff]
    %v181 = vld [vmem:[#allocation6 + $0x2b8] sm:$0xff]
    %v182 = vld [vmem:[#allocation6 + $0x2c0] sm:$0xff]
    %v183 = vld [vmem:[#allocation6 + $0x2c8] sm:$0xff]
    %v184 = vld [vmem:[#allocation6 + $0x2d0] sm:$0xff]
    %v185 = vld [vmem:[#allocation6 + $0x2d8] sm:$0xff]
    %v186 = vld [vmem:[#allocation6 + $0x2e0] sm:$0xff]
    %v187 = vld [vmem:[#allocation6 + $0x2e8] sm:$0xff]
    %v188 = vld [vmem:[#allocation6 + $0x2f0] sm:$0xff]
    %v189 = vld [vmem:[#allocation6 + $0x2f8] sm:$0xff]
    %v190 = vld [vmem:[#allocation6 + $0x300] sm:$0xff]
    %v191 = vld [vmem:[#allocation6 + $0x308] sm:$0xff]
    %v192 = vld [vmem:[#allocation6 + $0x310] sm:$0xff]
    %v193 = vld [vmem:[#allocation6 + $0x318] sm:$0xff]
    %v194 = vld [vmem:[#allocation6 + $0x320] sm:$0xff]
    %v195 = vld [vmem:[#allocation6 + $0x328] sm:$0xff]
    %v196 = vld [vmem:[#allocation6 + $0x330] sm:$0xff]
    %v197 = vld [vmem:[#allocation6 + $0x338] sm:$0xff]
    %v198 = vld [vmem:[#allocation6 + $0x340] sm:$0xff]
    %v199 = vld [vmem:[#allocation6 + $0x348] sm:$0xff]
    %v200 = vld [vmem:[#allocation6 + $0x350] sm:$0xff]
    %v201 = vld [vmem:[#allocation6 + $0x358] sm:$0xff]
    %v202 = vld [vmem:[#allocation6 + $0x360] sm:$0xff]
    %v203 = vld [vmem:[#allocation6 + $0x368] sm:$0xff]
    %v204 = vld [vmem:[#allocation6 + $0x370] sm:$0xff]
    %v205 = vld [vmem:[#allocation6 + $0x378] sm:$0xff]
    %v206 = vld [vmem:[#allocation6 + $0x380] sm:$0xff]
    %v207 = vld [vmem:[#allocation6 + $0x388] sm:$0xff]
    %v208 = vld [vmem:[#allocation6 + $0x390] sm:$0xff]
    %v209 = vld [vmem:[#allocation6 + $0x398] sm:$0xff]
    %v210 = vld [vmem:[#allocation6 + $0x3a0] sm:$0xff]
    %v211 = vld [vmem:[#allocation6 + $0x3a8] sm:$0xff]
    %v212 = vld [vmem:[#allocation6 + $0x3b0] sm:$0xff]
    %v213 = vld [vmem:[#allocation6 + $0x3b8] sm:$0xff]
    %v214 = vld [vmem:[#allocation6 + $0x3c0] sm:$0xff]
    %v215 = vld [vmem:[#allocation6 + $0x3c8] sm:$0xff]
    %v216 = vld [vmem:[#allocation6 + $0x3d0] sm:$0xff]
    %v217 = vld [vmem:[#allocation6 + $0x3d8] sm:$0xff]
    %v218 = vld [vmem:[#allocation6 + $0x3e0] sm:$0xff]
    %v219 = vld [vmem:[#allocation6 + $0x3e8] sm:$0xff]
    %v220 = vld [vmem:[#allocation6 + $0x3f0] sm:$0xff]
    %v221 = vld [vmem:[#allocation6 + $0x3f8] sm:$0xff]
    %222 = vmatprep.subr.mxu0 0.0
    %223 = vmatpush1.msra.mxu0 %v94
    %224 = vmatprep.subr.mxu0 0.0
    %225 = vmatpush1.msra.mxu0 %v95
    %226 = vmatprep.subr.mxu0 0.0
    %227 = vmatpush1.msra.mxu0 %v96
    %228 = vmatprep.subr.mxu0 0.0
    %229 = vmatpush1.msra.mxu0 %v97
    %230 = vmatprep.subr.mxu0 0.0
    %231 = vmatpush1.msra.mxu0 %v98
    %232 = vmatprep.subr.mxu0 0.0
    %233 = vmatpush1.msra.mxu0 %v99
    %234 = vmatprep.subr.mxu0 0.0
    %235 = vmatpush1.msra.mxu0 %v100
    %236 = vmatprep.subr.mxu0 0.0
    %237 = vmatpush1.msra.mxu0 %v101
    %238 = vmatprep.subr.mxu0 0.0
    %239 = vmatpush1.msra.mxu0 %v102
    %240 = vmatprep.subr.mxu0 0.0
    %241 = vmatpush1.msra.mxu0 %v103
    %242 = vmatprep.subr.mxu0 0.0
    %243 = vmatpush1.msra.mxu0 %v104
    %244 = vmatprep.subr.mxu0 0.0
    %245 = vmatpush1.msra.mxu0 %v105
    %246 = vmatprep.subr.mxu0 0.0
    %247 = vmatpush1.msra.mxu0 %v106
    %248 = vmatprep.subr.mxu0 0.0
    %249 = vmatpush1.msra.mxu0 %v107
    %250 = vmatprep.subr.mxu0 0.0
    %251 = vmatpush1.msra.mxu0 %v108
    %252 = vmatprep.subr.mxu0 0.0
    %253 = vmatpush1.msra.mxu0 %v109
    %254 = vmatprep.subr.mxu0 0.0
    %255 = vmatpush1.msra.mxu0 %v110
    %256 = vmatprep.subr.mxu0 0.0
    %257 = vmatpush1.msra.mxu0 %v111
    %258 = vmatprep.subr.mxu0 0.0
    %259 = vmatpush1.msra.mxu0 %v112
    %260 = vmatprep.subr.mxu0 0.0
    %261 = vmatpush1.msra.mxu0 %v113
    %262 = vmatprep.subr.mxu0 0.0
    %263 = vmatpush1.msra.mxu0 %v114
    %264 = vmatprep.subr.mxu0 0.0
    %265 = vmatpush1.msra.mxu0 %v115
    %266 = vmatprep.subr.mxu0 0.0
    %267 = vmatpush1.msra.mxu0 %v116
    %268 = vmatprep.subr.mxu0 0.0
    %269 = vmatpush1.msra.mxu0 %v117
    %270 = vmatprep.subr.mxu0 0.0
    %271 = vmatpush1.msra.mxu0 %v118
    %272 = vmatprep.subr.mxu0 0.0
    %273 = vmatpush1.msra.mxu0 %v119
    %274 = vmatprep.subr.mxu0 0.0
    %275 = vmatpush1.msra.mxu0 %v120
    %276 = vmatprep.subr.mxu0 0.0
    %277 = vmatpush1.msra.mxu0 %v121
    %278 = vmatprep.subr.mxu0 0.0
    %279 = vmatpush1.msra.mxu0 %v122
    %280 = vmatprep.subr.mxu0 0.0
    %281 = vmatpush1.msra.mxu0 %v123
    %282 = vmatprep.subr.mxu0 0.0
    %283 = vmatpush1.msra.mxu0 %v124
    %284 = vmatprep.subr.mxu0 0.0
    %285 = vmatpush1.msra.mxu0 %v125
    %286 = vmatprep.mubr.f32.mxu0 %v87
    %287 = vmatmul.mubr.f32.gmra.mrb[0].mxu0 %v86
    %v288 = vpop.f32.mrb[0].mxu0
    %v289 = vadd.f32 0.0, %v288
    %v290 = vpop.f32.mrb[0].mxu0
    %291 = vdwg.mxu0
    %292 = vmatprep.subr.mxu0 0.0
    %293 = vmatpush1.msra.mxu0 %v126
    %294 = vmatprep.subr.mxu0 0.0
    %295 = vmatpush1.msra.mxu0 %v127
    %296 = vmatprep.subr.mxu0 0.0
    %297 = vmatpush1.msra.mxu0 %v128
    %298 = vmatprep.subr.mxu0 0.0
    %299 = vmatpush1.msra.mxu0 %v129
    %300 = vmatprep.subr.mxu0 0.0
    %301 = vmatpush1.msra.mxu0 %v130
    %302 = vmatprep.subr.mxu0 0.0
    %303 = vmatpush1.msra.mxu0 %v131
    %304 = vmatprep.subr.mxu0 0.0
    %305 = vmatpush1.msra.mxu0 %v132
    %306 = vmatprep.subr.mxu0 0.0
    %307 = vmatpush1.msra.mxu0 %v133
    %308 = vmatprep.subr.mxu0 0.0
    %309 = vmatpush1.msra.mxu0 %v134
    %310 = vmatprep.subr.mxu0 0.0
    %311 = vmatpush1.msra.mxu0 %v135
    %312 = vmatprep.subr.mxu0 0.0
    %313 = vmatpush1.msra.mxu0 %v136
    %314 = vmatprep.subr.mxu0 0.0
    %315 = vmatpush1.msra.mxu0 %v137
    %316 = vmatprep.subr.mxu0 0.0
    %317 = vmatpush1.msra.mxu0 %v138
    %318 = vmatprep.subr.mxu0 0.0
    %319 = vmatpush1.msra.mxu0 %v139
    %320 = vmatprep.subr.mxu0 0.0
    %321 = vmatpush1.msra.mxu0 %v140
    %322 = vmatprep.subr.mxu0 0.0
    %323 = vmatpush1.msra.mxu0 %v141
    %324 = vmatprep.subr.mxu0 0.0
    %325 = vmatpush1.msra.mxu0 %v142
    %326 = vmatprep.subr.mxu0 0.0
    %327 = vmatpush1.msra.mxu0 %v143
    %328 = vmatprep.subr.mxu0 0.0
    %329 = vmatpush1.msra.mxu0 %v144
    %330 = vmatprep.subr.mxu0 0.0
    %331 = vmatpush1.msra.mxu0 %v145
    %332 = vmatprep.subr.mxu0 0.0
    %333 = vmatpush1.msra.mxu0 %v146
    %334 = vmatprep.subr.mxu0 0.0
    %335 = vmatpush1.msra.mxu0 %v147
    %336 = vmatprep.subr.mxu0 0.0
    %337 = vmatpush1.msra.mxu0 %v148
    %338 = vmatprep.subr.mxu0 0.0
    %339 = vmatpush1.msra.mxu0 %v149
    %340 = vmatprep.subr.mxu0 0.0
    %341 = vmatpush1.msra.mxu0 %v150
    %342 = vmatprep.subr.mxu0 0.0
    %343 = vmatpush1.msra.mxu0 %v151
    %344 = vmatprep.subr.mxu0 0.0
    %345 = vmatpush1.msra.mxu0 %v152
    %346 = vmatprep.subr.mxu0 0.0
    %347 = vmatpush1.msra.mxu0 %v153
    %348 = vmatprep.subr.mxu0 0.0
    %349 = vmatpush1.msra.mxu0 %v154
    %350 = vmatprep.subr.mxu0 0.0
    %351 = vmatpush1.msra.mxu0 %v155
    %352 = vmatprep.subr.mxu0 0.0
    %353 = vmatpush1.msra.mxu0 %v156
    %354 = vmatprep.subr.mxu0 0.0
    %355 = vmatpush1.msra.mxu0 %v157
    %356 = vmatprep.mubr.f32.mxu0 %v89
    %357 = vmatmul.mubr.f32.gmra.mrb[0].mxu0 %v88
    %v358 = vpop.f32.mrb[0].mxu0
    %v359 = vadd.f32 %v289, %v358
    %v360 = vpop.f32.mrb[0].mxu0
    %361 = vdwg.mxu0
    %362 = vmatprep.subr.mxu0 0.0
    %363 = vmatpush1.msra.mxu0 %v158
    %364 = vmatprep.subr.mxu0 0.0
    %365 = vmatpush1.msra.mxu0 %v159
    %366 = vmatprep.subr.mxu0 0.0
    %367 = vmatpush1.msra.mxu0 %v160
    %368 = vmatprep.subr.mxu0 0.0
    %369 = vmatpush1.msra.mxu0 %v161
    %370 = vmatprep.subr.mxu0 0.0
    %371 = vmatpush1.msra.mxu0 %v162
    %372 = vmatprep.subr.mxu0 0.0
    %373 = vmatpush1.msra.mxu0 %v163
    %374 = vmatprep.subr.mxu0 0.0
    %375 = vmatpush1.msra.mxu0 %v164
    %376 = vmatprep.subr.mxu0 0.0
    %377 = vmatpush1.msra.mxu0 %v165
    %378 = vmatprep.subr.mxu0 0.0
    %379 = vmatpush1.msra.mxu0 %v166
    %380 = vmatprep.subr.mxu0 0.0
    %381 = vmatpush1.msra.mxu0 %v167
    %382 = vmatprep.subr.mxu0 0.0
    %383 = vmatpush1.msra.mxu0 %v168
    %384 = vmatprep.subr.mxu0 0.0
    %385 = vmatpush1.msra.mxu0 %v169
    %386 = vmatprep.subr.mxu0 0.0
    %387 = vmatpush1.msra.mxu0 %v170
    %388 = vmatprep.subr.mxu0 0.0
    %389 = vmatpush1.msra.mxu0 %v171
    %390 = vmatprep.subr.mxu0 0.0
    %391 = vmatpush1.msra.mxu0 %v172
    %392 = vmatprep.subr.mxu0 0.0
    %393 = vmatpush1.msra.mxu0 %v173
    %394 = vmatprep.subr.mxu0 0.0
    %395 = vmatpush1.msra.mxu0 %v174
    %396 = vmatprep.subr.mxu0 0.0
    %397 = vmatpush1.msra.mxu0 %v175
    %398 = vmatprep.subr.mxu0 0.0
    %399 = vmatpush1.msra.mxu0 %v176
    %400 = vmatprep.subr.mxu0 0.0
    %401 = vmatpush1.msra.mxu0 %v177
    %402 = vmatprep.subr.mxu0 0.0
    %403 = vmatpush1.msra.mxu0 %v178
    %404 = vmatprep.subr.mxu0 0.0
    %405 = vmatpush1.msra.mxu0 %v179
    %406 = vmatprep.subr.mxu0 0.0
    %407 = vmatpush1.msra.mxu0 %v180
    %408 = vmatprep.subr.mxu0 0.0
    %409 = vmatpush1.msra.mxu0 %v181
    %410 = vmatprep.subr.mxu0 0.0
    %411 = vmatpush1.msra.mxu0 %v182
    %412 = vmatprep.subr.mxu0 0.0
    %413 = vmatpush1.msra.mxu0 %v183
    %414 = vmatprep.subr.mxu0 0.0
    %415 = vmatpush1.msra.mxu0 %v184
    %416 = vmatprep.subr.mxu0 0.0
    %417 = vmatpush1.msra.mxu0 %v185
    %418 = vmatprep.subr.mxu0 0.0
    %419 = vmatpush1.msra.mxu0 %v186
    %420 = vmatprep.subr.mxu0 0.0
    %421 = vmatpush1.msra.mxu0 %v187
    %422 = vmatprep.subr.mxu0 0.0
    %423 = vmatpush1.msra.mxu0 %v188
    %424 = vmatprep.subr.mxu0 0.0
    %425 = vmatpush1.msra.mxu0 %v189
    %426 = vmatprep.mubr.f32.mxu0 %v91
    %427 = vmatmul.mubr.f32.gmra.mrb[0].mxu0 %v90
    %v428 = vpop.f32.mrb[0].mxu0
    %v429 = vadd.f32 %v359, %v428
    %v430 = vpop.f32.mrb[0].mxu0
    %431 = vdwg.mxu0
    %432 = vmatprep.subr.mxu0 0.0
    %433 = vmatpush1.msra.mxu0 %v190
    %434 = vmatprep.subr.mxu0 0.0
    %435 = vmatpush1.msra.mxu0 %v191
    %436 = vmatprep.subr.mxu0 0.0
    %437 = vmatpush1.msra.mxu0 %v192
    %438 = vmatprep.subr.mxu0 0.0
    %439 = vmatpush1.msra.mxu0 %v193
    %440 = vmatprep.subr.mxu0 0.0
    %441 = vmatpush1.msra.mxu0 %v194
    %442 = vmatprep.subr.mxu0 0.0
    %443 = vmatpush1.msra.mxu0 %v195
    %444 = vmatprep.subr.mxu0 0.0
    %445 = vmatpush1.msra.mxu0 %v196
    %446 = vmatprep.subr.mxu0 0.0
    %447 = vmatpush1.msra.mxu0 %v197
    %448 = vmatprep.subr.mxu0 0.0
    %449 = vmatpush1.msra.mxu0 %v198
    %450 = vmatprep.subr.mxu0 0.0
    %451 = vmatpush1.msra.mxu0 %v199
    %452 = vmatprep.subr.mxu0 0.0
    %453 = vmatpush1.msra.mxu0 %v200
    %454 = vmatprep.subr.mxu0 0.0
    %455 = vmatpush1.msra.mxu0 %v201
    %456 = vmatprep.subr.mxu0 0.0
    %457 = vmatpush1.msra.mxu0 %v202
    %458 = vmatprep.subr.mxu0 0.0
    %459 = vmatpush1.msra.mxu0 %v203
    %460 = vmatprep.subr.mxu0 0.0
    %461 = vmatpush1.msra.mxu0 %v204
    %462 = vmatprep.subr.mxu0 0.0
    %463 = vmatpush1.msra.mxu0 %v205
    %464 = vmatprep.subr.mxu0 0.0
    %465 = vmatpush1.msra.mxu0 %v206
    %466 = vmatprep.subr.mxu0 0.0
    %467 = vmatpush1.msra.mxu0 %v207
    %468 = vmatprep.subr.mxu0 0.0
    %469 = vmatpush1.msra.mxu0 %v208
    %470 = vmatprep.subr.mxu0 0.0
    %471 = vmatpush1.msra.mxu0 %v209
    %472 = vmatprep.subr.mxu0 0.0
    %473 = vmatpush1.msra.mxu0 %v210
    %474 = vmatprep.subr.mxu0 0.0
    %475 = vmatpush1.msra.mxu0 %v211
    %476 = vmatprep.subr.mxu0 0.0
    %477 = vmatpush1.msra.mxu0 %v212
    %478 = vmatprep.subr.mxu0 0.0
    %479 = vmatpush1.msra.mxu0 %v213
    %480 = vmatprep.subr.mxu0 0.0
    %481 = vmatpush1.msra.mxu0 %v214
    %482 = vmatprep.subr.mxu0 0.0
    %483 = vmatpush1.msra.mxu0 %v215
    %484 = vmatprep.subr.mxu0 0.0
    %485 = vmatpush1.msra.mxu0 %v216
    %486 = vmatprep.subr.mxu0 0.0
    %487 = vmatpush1.msra.mxu0 %v217
    %488 = vmatprep.subr.mxu0 0.0
    %489 = vmatpush1.msra.mxu0 %v218
    %490 = vmatprep.subr.mxu0 0.0
    %491 = vmatpush1.msra.mxu0 %v219
    %492 = vmatprep.subr.mxu0 0.0
    %493 = vmatpush1.msra.mxu0 %v220
    %494 = vmatprep.subr.mxu0 0.0
    %495 = vmatpush1.msra.mxu0 %v221
    %496 = vmatprep.mubr.f32.mxu0 %v93
    %497 = vmatmul.mubr.f32.gmra.mrb[0].mxu0 %v92
    %v498 = vpop.f32.mrb[0].mxu0
    %v499 = vadd.f32 %v429, %v498
    %v500 = vpop.f32.mrb[0].mxu0
    %501 = vdwg.mxu0
    %v502 = vadd.f32 %v85, %v499
    %503 = vst [vmem:[#allocation2] sm:$0xff] %v502
    // Predicated region
    $region50: #{tpu_custom_call.1} parent=1 // pred_check
      %p504 = pneg %p80
    $region51: #{tpu_custom_call.1} parent=1 // pred_check_branch
      %506 = sbr.rel (%p504) target = $region53
    $region52: #{tpu_custom_call.1} parent=1 // pred_region
      %v507 = vld [vmem:[#allocation2] sm:$0xff]
      %v508 = vld [vmem:[%s2] sm:$0x1]
      %v510 = vlaneseq
      %v511 = vshrl.u32 %v510, 7
      %v512 = vsub.s32 0, %v511
      %v513 = vrot.slane %v508, %v512
      %v515 = vadd.f32 %v507, %v513
      %v516 = vmax.f32 %v515, 0.0
      %v517 = vld [vmem:[#allocation8] sm:$0xff]
      %v518 = vld [vmem:[#allocation8 + $0x8] sm:$0xff]
      %v519 = vld [vmem:[#allocation8 + $0x10] sm:$0xff]
      %v520 = vld [vmem:[#allocation8 + $0x18] sm:$0xff]
      %v521 = vld [vmem:[#allocation8 + $0x20] sm:$0xff]
      %v522 = vld [vmem:[#allocation8 + $0x28] sm:$0xff]
      %v523 = vld [vmem:[#allocation8 + $0x30] sm:$0xff]
      %v524 = vld [vmem:[#allocation8 + $0x38] sm:$0xff]
      %v525 = vld [vmem:[#allocation8 + $0x40] sm:$0xff]
      %v526 = vld [vmem:[#allocation8 + $0x48] sm:$0xff]
      %v527 = vld [vmem:[#allocation8 + $0x50] sm:$0xff]
      %v528 = vld [vmem:[#allocation8 + $0x58] sm:$0xff]
      %v529 = vld [vmem:[#allocation8 + $0x60] sm:$0xff]
      %v530 = vld [vmem:[#allocation8 + $0x68] sm:$0xff]
      %v531 = vld [vmem:[#allocation8 + $0x70] sm:$0xff]
      %v532 = vld [vmem:[#allocation8 + $0x78] sm:$0xff]
      %v533 = vld [vmem:[%s4] sm:$0x1]
      %v535 = vlaneseq
      %v536 = vshrl.u32 %v535, 7
      %v537 = vsub.s32 0, %v536
      %v538 = vrot.slane %v533, %v537
      %540 = vmatprep.subr.mxu0 0.0
      %541 = vmatpush1.msra.mxu0 %v517
      %542 = vmatprep.subr.mxu0 0.0
      %543 = vmatpush1.msra.mxu0 %v518
      %544 = vmatprep.subr.mxu0 0.0
      %545 = vmatpush1.msra.mxu0 %v519
      %546 = vmatprep.subr.mxu0 0.0
      %547 = vmatpush1.msra.mxu0 %v520
      %548 = vmatprep.subr.mxu0 0.0
      %549 = vmatpush1.msra.mxu0 %v521
      %550 = vmatprep.subr.mxu0 0.0
      %551 = vmatpush1.msra.mxu0 %v522
      %552 = vmatprep.subr.mxu0 0.0
      %553 = vmatpush1.msra.mxu0 %v523
      %554 = vmatprep.subr.mxu0 0.0
      %555 = vmatpush1.msra.mxu0 %v524
      %556 = vmatprep.subr.mxu0 0.0
      %557 = vmatpush1.msra.mxu0 %v525
      %558 = vmatprep.subr.mxu0 0.0
      %559 = vmatpush1.msra.mxu0 %v526
      %560 = vmatprep.subr.mxu0 0.0
      %561 = vmatpush1.msra.mxu0 %v527
      %562 = vmatprep.subr.mxu0 0.0
      %563 = vmatpush1.msra.mxu0 %v528
      %564 = vmatprep.subr.mxu0 0.0
      %565 = vmatpush1.msra.mxu0 %v529
      %566 = vmatprep.subr.mxu0 0.0
      %567 = vmatpush1.msra.mxu0 %v530
      %568 = vmatprep.subr.mxu0 0.0
      %569 = vmatpush1.msra.mxu0 %v531
      %570 = vmatprep.subr.mxu0 0.0
      %571 = vmatpush1.msra.mxu0 %v532
      %572 = vmatprep.subr.mxu0 0.0
      %573 = vmatpush1.msra.mxu0 0.0
      %574 = vmatprep.subr.mxu0 0.0
      %575 = vmatpush1.msra.mxu0 0.0
      %576 = vmatprep.subr.mxu0 0.0
      %577 = vmatpush1.msra.mxu0 0.0
      %578 = vmatprep.subr.mxu0 0.0
      %579 = vmatpush1.msra.mxu0 0.0
      %580 = vmatprep.subr.mxu0 0.0
      %581 = vmatpush1.msra.mxu0 0.0
      %582 = vmatprep.subr.mxu0 0.0
      %583 = vmatpush1.msra.mxu0 0.0
      %584 = vmatprep.subr.mxu0 0.0
      %585 = vmatpush1.msra.mxu0 0.0
      %586 = vmatprep.subr.mxu0 0.0
      %587 = vmatpush1.msra.mxu0 0.0
      %588 = vmatprep.subr.mxu0 0.0
      %589 = vmatpush1.msra.mxu0 0.0
      %590 = vmatprep.subr.mxu0 0.0
      %591 = vmatpush1.msra.mxu0 0.0
      %592 = vmatprep.subr.mxu0 0.0
      %593 = vmatpush1.msra.mxu0 0.0
      %594 = vmatprep.subr.mxu0 0.0
      %595 = vmatpush1.msra.mxu0 0.0
      %596 = vmatprep.subr.mxu0 0.0
      %597 = vmatpush1.msra.mxu0 0.0
      %598 = vmatprep.subr.mxu0 0.0
      %599 = vmatpush1.msra.mxu0 0.0
      %600 = vmatprep.subr.mxu0 0.0
      %601 = vmatpush1.msra.mxu0 0.0
      %602 = vmatprep.subr.mxu0 0.0
      %603 = vmatpush1.msra.mxu0 0.0
      %604 = vmatprep.mubr.f32.mxu0 0.0
      %605 = vmatmul.mubr.f32.gmra.mrb[0].mxu0 %v516
      %v606 = vpop.f32.mrb[0].mxu0
      %v607 = vadd.f32 %v538, %v606
      %v608 = vpop.f32.mrb[0].mxu0
      %609 = vdwg.mxu0
      %v610 = vmax.f32 %v607, 0.0
      %s611 = scalar_lea.vmem [#allocation8], 128
      %v612 = vld [vmem:[%s611] sm:$0xff]
      %v613 = vld [vmem:[%s611 + $0x8] sm:$0xff]
      %v614 = vld [vmem:[%s611 + $0x10] sm:$0xff]
      %v615 = vld [vmem:[%s611 + $0x18] sm:$0xff]
      %v616 = vld [vmem:[%s611 + $0x20] sm:$0xff]
      %v617 = vld [vmem:[%s611 + $0x28] sm:$0xff]
      %v618 = vld [vmem:[%s611 + $0x30] sm:$0xff]
      %v619 = vld [vmem:[%s611 + $0x38] sm:$0xff]
      %v620 = vld [vmem:[%s611 + $0x40] sm:$0xff]
      %v621 = vld [vmem:[%s611 + $0x48] sm:$0xff]
      %v622 = vld [vmem:[%s611 + $0x50] sm:$0xff]
      %v623 = vld [vmem:[%s611 + $0x58] sm:$0xff]
      %v624 = vld [vmem:[%s611 + $0x60] sm:$0xff]
      %v625 = vld [vmem:[%s611 + $0x68] sm:$0xff]
      %v626 = vld [vmem:[%s611 + $0x70] sm:$0xff]
      %v627 = vld [vmem:[%s611 + $0x78] sm:$0xff]
      %s628 = scalar_lea.vmem %s4, 1
      %v629 = vld [vmem:[%s628] sm:$0x1]
      %v631 = vlaneseq
      %v632 = vshrl.u32 %v631, 7
      %v633 = vsub.s32 0, %v632
      %v634 = vrot.slane %v629, %v633
      %636 = vmatprep.subr.mxu0 0.0
      %637 = vmatpush1.msra.mxu0 %v612
      %638 = vmatprep.subr.mxu0 0.0
      %639 = vmatpush1.msra.mxu0 %v613
      %640 = vmatprep.subr.mxu0 0.0
      %641 = vmatpush1.msra.mxu0 %v614
      %642 = vmatprep.subr.mxu0 0.0
      %643 = vmatpush1.msra.mxu0 %v615
      %644 = vmatprep.subr.mxu0 0.0
      %645 = vmatpush1.msra.mxu0 %v616
      %646 = vmatprep.subr.mxu0 0.0
      %647 = vmatpush1.msra.mxu0 %v617
      %648 = vmatprep.subr.mxu0 0.0
      %649 = vmatpush1.msra.mxu0 %v618
      %650 = vmatprep.subr.mxu0 0.0
      %651 = vmatpush1.msra.mxu0 %v619
      %652 = vmatprep.subr.mxu0 0.0
      %653 = vmatpush1.msra.mxu0 %v620
      %654 = vmatprep.subr.mxu0 0.0
      %655 = vmatpush1.msra.mxu0 %v621
      %656 = vmatprep.subr.mxu0 0.0
      %657 = vmatpush1.msra.mxu0 %v622
      %658 = vmatprep.subr.mxu0 0.0
      %659 = vmatpush1.msra.mxu0 %v623
      %660 = vmatprep.subr.mxu0 0.0
      %661 = vmatpush1.msra.mxu0 %v624
      %662 = vmatprep.subr.mxu0 0.0
      %663 = vmatpush1.msra.mxu0 %v625
      %664 = vmatprep.subr.mxu0 0.0
      %665 = vmatpush1.msra.mxu0 %v626
      %666 = vmatprep.subr.mxu0 0.0
      %667 = vmatpush1.msra.mxu0 %v627
      %668 = vmatprep.subr.mxu0 0.0
      %669 = vmatpush1.msra.mxu0 0.0
      %670 = vmatprep.subr.mxu0 0.0
      %671 = vmatpush1.msra.mxu0 0.0
      %672 = vmatprep.subr.mxu0 0.0
      %673 = vmatpush1.msra.mxu0 0.0
      %674 = vmatprep.subr.mxu0 0.0
      %675 = vmatpush1.msra.mxu0 0.0
      %676 = vmatprep.subr.mxu0 0.0
      %677 = vmatpush1.msra.mxu0 0.0
      %678 = vmatprep.subr.mxu0 0.0
      %679 = vmatpush1.msra.mxu0 0.0
      %680 = vmatprep.subr.mxu0 0.0
      %681 = vmatpush1.msra.mxu0 0.0
      %682 = vmatprep.subr.mxu0 0.0
      %683 = vmatpush1.msra.mxu0 0.0
      %684 = vmatprep.subr.mxu0 0.0
      %685 = vmatpush1.msra.mxu0 0.0
      %686 = vmatprep.subr.mxu0 0.0
      %687 = vmatpush1.msra.mxu0 0.0
      %688 = vmatprep.subr.mxu0 0.0
      %689 = vmatpush1.msra.mxu0 0.0
      %690 = vmatprep.subr.mxu0 0.0
      %691 = vmatpush1.msra.mxu0 0.0
      %692 = vmatprep.subr.mxu0 0.0
      %693 = vmatpush1.msra.mxu0 0.0
      %694 = vmatprep.subr.mxu0 0.0
      %695 = vmatpush1.msra.mxu0 0.0
      %696 = vmatprep.subr.mxu0 0.0
      %697 = vmatpush1.msra.mxu0 0.0
      %698 = vmatprep.subr.mxu0 0.0
      %699 = vmatpush1.msra.mxu0 0.0
      %700 = vmatprep.mubr.f32.mxu0 0.0
      %701 = vmatmul.mubr.f32.gmra.mrb[0].mxu0 %v610
      %v702 = vpop.f32.mrb[0].mxu0
      %v703 = vadd.f32 %v634, %v702
      %v704 = vpop.f32.mrb[0].mxu0
      %705 = vdwg.mxu0
      %v706 = vmax.f32 %v703, 0.0
      %s707 = scalar_lea.vmem [#allocation8], 256
      %v708 = vld [vmem:[%s707] sm:$0xff]
      %v709 = vld [vmem:[%s707 + $0x8] sm:$0xff]
      %v710 = vld [vmem:[%s707 + $0x10] sm:$0xff]
      %v711 = vld [vmem:[%s707 + $0x18] sm:$0xff]
      %v712 = vld [vmem:[%s707 + $0x20] sm:$0xff]
      %v713 = vld [vmem:[%s707 + $0x28] sm:$0xff]
      %v714 = vld [vmem:[%s707 + $0x30] sm:$0xff]
      %v715 = vld [vmem:[%s707 + $0x38] sm:$0xff]
      %v716 = vld [vmem:[%s707 + $0x40] sm:$0xff]
      %v717 = vld [vmem:[%s707 + $0x48] sm:$0xff]
      %v718 = vld [vmem:[%s707 + $0x50] sm:$0xff]
      %v719 = vld [vmem:[%s707 + $0x58] sm:$0xff]
      %v720 = vld [vmem:[%s707 + $0x60] sm:$0xff]
      %v721 = vld [vmem:[%s707 + $0x68] sm:$0xff]
      %v722 = vld [vmem:[%s707 + $0x70] sm:$0xff]
      %v723 = vld [vmem:[%s707 + $0x78] sm:$0xff]
      %s724 = scalar_lea.vmem %s4, 2
      %v725 = vld [vmem:[%s724] sm:$0x1]
      %v727 = vlaneseq
      %v728 = vshrl.u32 %v727, 7
      %v729 = vsub.s32 0, %v728
      %v730 = vrot.slane %v725, %v729
      %732 = vmatprep.subr.mxu0 0.0
      %733 = vmatpush1.msra.mxu0 %v708
      %734 = vmatprep.subr.mxu0 0.0
      %735 = vmatpush1.msra.mxu0 %v709
      %736 = vmatprep.subr.mxu0 0.0
      %737 = vmatpush1.msra.mxu0 %v710
      %738 = vmatprep.subr.mxu0 0.0
      %739 = vmatpush1.msra.mxu0 %v711
      %740 = vmatprep.subr.mxu0 0.0
      %741 = vmatpush1.msra.mxu0 %v712
      %742 = vmatprep.subr.mxu0 0.0
      %743 = vmatpush1.msra.mxu0 %v713
      %744 = vmatprep.subr.mxu0 0.0
      %745 = vmatpush1.msra.mxu0 %v714
      %746 = vmatprep.subr.mxu0 0.0
      %747 = vmatpush1.msra.mxu0 %v715
      %748 = vmatprep.subr.mxu0 0.0
      %749 = vmatpush1.msra.mxu0 %v716
      %750 = vmatprep.subr.mxu0 0.0
      %751 = vmatpush1.msra.mxu0 %v717
      %752 = vmatprep.subr.mxu0 0.0
      %753 = vmatpush1.msra.mxu0 %v718
      %754 = vmatprep.subr.mxu0 0.0
      %755 = vmatpush1.msra.mxu0 %v719
      %756 = vmatprep.subr.mxu0 0.0
      %757 = vmatpush1.msra.mxu0 %v720
      %758 = vmatprep.subr.mxu0 0.0
      %759 = vmatpush1.msra.mxu0 %v721
      %760 = vmatprep.subr.mxu0 0.0
      %761 = vmatpush1.msra.mxu0 %v722
      %762 = vmatprep.subr.mxu0 0.0
      %763 = vmatpush1.msra.mxu0 %v723
      %764 = vmatprep.subr.mxu0 0.0
      %765 = vmatpush1.msra.mxu0 0.0
      %766 = vmatprep.subr.mxu0 0.0
      %767 = vmatpush1.msra.mxu0 0.0
      %768 = vmatprep.subr.mxu0 0.0
      %769 = vmatpush1.msra.mxu0 0.0
      %770 = vmatprep.subr.mxu0 0.0
      %771 = vmatpush1.msra.mxu0 0.0
      %772 = vmatprep.subr.mxu0 0.0
      %773 = vmatpush1.msra.mxu0 0.0
      %774 = vmatprep.subr.mxu0 0.0
      %775 = vmatpush1.msra.mxu0 0.0
      %776 = vmatprep.subr.mxu0 0.0
      %777 = vmatpush1.msra.mxu0 0.0
      %778 = vmatprep.subr.mxu0 0.0
      %779 = vmatpush1.msra.mxu0 0.0
      %780 = vmatprep.subr.mxu0 0.0
      %781 = vmatpush1.msra.mxu0 0.0
      %782 = vmatprep.subr.mxu0 0.0
      %783 = vmatpush1.msra.mxu0 0.0
      %784 = vmatprep.subr.mxu0 0.0
      %785 = vmatpush1.msra.mxu0 0.0
      %786 = vmatprep.subr.mxu0 0.0
      %787 = vmatpush1.msra.mxu0 0.0
      %788 = vmatprep.subr.mxu0 0.0
      %789 = vmatpush1.msra.mxu0 0.0
      %790 = vmatprep.subr.mxu0 0.0
      %791 = vmatpush1.msra.mxu0 0.0
      %792 = vmatprep.subr.mxu0 0.0
      %793 = vmatpush1.msra.mxu0 0.0
      %794 = vmatprep.subr.mxu0 0.0
      %795 = vmatpush1.msra.mxu0 0.0
      %796 = vmatprep.mubr.f32.mxu0 0.0
      %797 = vmatmul.mubr.f32.gmra.mrb[0].mxu0 %v706
      %v798 = vpop.f32.mrb[0].mxu0
      %v799 = vadd.f32 %v730, %v798
      %v800 = vpop.f32.mrb[0].mxu0
      %801 = vdwg.mxu0
      %v802 = vmax.f32 %v799, 0.0
      %s803 = scalar_lea.vmem [#allocation8], 384
      %v804 = vld [vmem:[%s803] sm:$0xff]
      %v805 = vld [vmem:[%s803 + $0x8] sm:$0xff]
      %v806 = vld [vmem:[%s803 + $0x10] sm:$0xff]
      %v807 = vld [vmem:[%s803 + $0x18] sm:$0xff]
      %v808 = vld [vmem:[%s803 + $0x20] sm:$0xff]
      %v809 = vld [vmem:[%s803 + $0x28] sm:$0xff]
      %v810 = vld [vmem:[%s803 + $0x30] sm:$0xff]
      %v811 = vld [vmem:[%s803 + $0x38] sm:$0xff]
      %v812 = vld [vmem:[%s803 + $0x40] sm:$0xff]
      %v813 = vld [vmem:[%s803 + $0x48] sm:$0xff]
      %v814 = vld [vmem:[%s803 + $0x50] sm:$0xff]
      %v815 = vld [vmem:[%s803 + $0x58] sm:$0xff]
      %v816 = vld [vmem:[%s803 + $0x60] sm:$0xff]
      %v817 = vld [vmem:[%s803 + $0x68] sm:$0xff]
      %v818 = vld [vmem:[%s803 + $0x70] sm:$0xff]
      %v819 = vld [vmem:[%s803 + $0x78] sm:$0xff]
      %s820 = scalar_lea.vmem %s4, 3
      %v821 = vld [vmem:[%s820] sm:$0x1]
      %v823 = vlaneseq
      %v824 = vshrl.u32 %v823, 7
      %v825 = vsub.s32 0, %v824
      %v826 = vrot.slane %v821, %v825
      %828 = vmatprep.subr.mxu0 0.0
      %829 = vmatpush1.msra.mxu0 %v804
      %830 = vmatprep.subr.mxu0 0.0
      %831 = vmatpush1.msra.mxu0 %v805
      %832 = vmatprep.subr.mxu0 0.0
      %833 = vmatpush1.msra.mxu0 %v806
      %834 = vmatprep.subr.mxu0 0.0
      %835 = vmatpush1.msra.mxu0 %v807
      %836 = vmatprep.subr.mxu0 0.0
      %837 = vmatpush1.msra.mxu0 %v808
      %838 = vmatprep.subr.mxu0 0.0
      %839 = vmatpush1.msra.mxu0 %v809
      %840 = vmatprep.subr.mxu0 0.0
      %841 = vmatpush1.msra.mxu0 %v810
      %842 = vmatprep.subr.mxu0 0.0
      %843 = vmatpush1.msra.mxu0 %v811
      %844 = vmatprep.subr.mxu0 0.0
      %845 = vmatpush1.msra.mxu0 %v812
      %846 = vmatprep.subr.mxu0 0.0
      %847 = vmatpush1.msra.mxu0 %v813
      %848 = vmatprep.subr.mxu0 0.0
      %849 = vmatpush1.msra.mxu0 %v814
      %850 = vmatprep.subr.mxu0 0.0
      %851 = vmatpush1.msra.mxu0 %v815
      %852 = vmatprep.subr.mxu0 0.0
      %853 = vmatpush1.msra.mxu0 %v816
      %854 = vmatprep.subr.mxu0 0.0
      %855 = vmatpush1.msra.mxu0 %v817
      %856 = vmatprep.subr.mxu0 0.0
      %857 = vmatpush1.msra.mxu0 %v818
      %858 = vmatprep.subr.mxu0 0.0
      %859 = vmatpush1.msra.mxu0 %v819
      %860 = vmatprep.subr.mxu0 0.0
      %861 = vmatpush1.msra.mxu0 0.0
      %862 = vmatprep.subr.mxu0 0.0
      %863 = vmatpush1.msra.mxu0 0.0
      %864 = vmatprep.subr.mxu0 0.0
      %865 = vmatpush1.msra.mxu0 0.0
      %866 = vmatprep.subr.mxu0 0.0
      %867 = vmatpush1.msra.mxu0 0.0
      %868 = vmatprep.subr.mxu0 0.0
      %869 = vmatpush1.msra.mxu0 0.0
      %870 = vmatprep.subr.mxu0 0.0
      %871 = vmatpush1.msra.mxu0 0.0
      %872 = vmatprep.subr.mxu0 0.0
      %873 = vmatpush1.msra.mxu0 0.0
      %874 = vmatprep.subr.mxu0 0.0
      %875 = vmatpush1.msra.mxu0 0.0
      %876 = vmatprep.subr.mxu0 0.0
      %877 = vmatpush1.msra.mxu0 0.0
      %878 = vmatprep.subr.mxu0 0.0
      %879 = vmatpush1.msra.mxu0 0.0
      %880 = vmatprep.subr.mxu0 0.0
      %881 = vmatpush1.msra.mxu0 0.0
      %882 = vmatprep.subr.mxu0 0.0
      %883 = vmatpush1.msra.mxu0 0.0
      %884 = vmatprep.subr.mxu0 0.0
      %885 = vmatpush1.msra.mxu0 0.0
      %886 = vmatprep.subr.mxu0 0.0
      %887 = vmatpush1.msra.mxu0 0.0
      %888 = vmatprep.subr.mxu0 0.0
      %889 = vmatpush1.msra.mxu0 0.0
      %890 = vmatprep.subr.mxu0 0.0
      %891 = vmatpush1.msra.mxu0 0.0
      %892 = vmatprep.mubr.f32.mxu0 0.0
      %893 = vmatmul.mubr.f32.gmra.mrb[0].mxu0 %v802
      %v894 = vpop.f32.mrb[0].mxu0
      %v895 = vadd.f32 %v826, %v894
      %v896 = vpop.f32.mrb[0].mxu0
      %897 = vdwg.mxu0
      %v898 = vmax.f32 %v895, 0.0
      %v899 = vld [vmem:[#allocation9] sm:$0xff]
      %v900 = vld [vmem:[#allocation9 + $0x8] sm:$0xff]
      %v901 = vld [vmem:[#allocation9 + $0x10] sm:$0xff]
      %v902 = vld [vmem:[#allocation9 + $0x18] sm:$0xff]
      %v903 = vld [vmem:[#allocation9 + $0x20] sm:$0xff]
      %v904 = vld [vmem:[#allocation9 + $0x28] sm:$0xff]
      %v905 = vld [vmem:[#allocation9 + $0x30] sm:$0xff]
      %v906 = vld [vmem:[#allocation9 + $0x38] sm:$0xff]
      %v907 = vld [vmem:[#allocation9 + $0x40] sm:$0xff]
      %v908 = vld [vmem:[#allocation9 + $0x48] sm:$0xff]
      %v909 = vld [vmem:[#allocation9 + $0x50] sm:$0xff]
      %v910 = vld [vmem:[#allocation9 + $0x58] sm:$0xff]
      %v911 = vld [vmem:[#allocation9 + $0x60] sm:$0xff]
      %v912 = vld [vmem:[#allocation9 + $0x68] sm:$0xff]
      %v913 = vld [vmem:[#allocation9 + $0x70] sm:$0xff]
      %v914 = vld [vmem:[#allocation9 + $0x78] sm:$0xff]
      %v915 = vld [vmem:[%s6] sm:$0x1]
      %v917 = vlaneseq
      %v918 = vshrl.u32 %v917, 7
      %v919 = vsub.s32 0, %v918
      %v920 = vrot.slane %v915, %v919
      %922 = vmatprep.subr.mxu0 0.0
      %923 = vmatpush1.msra.mxu0 %v899
      %924 = vmatprep.subr.mxu0 0.0
      %925 = vmatpush1.msra.mxu0 %v900
      %926 = vmatprep.subr.mxu0 0.0
      %927 = vmatpush1.msra.mxu0 %v901
      %928 = vmatprep.subr.mxu0 0.0
      %929 = vmatpush1.msra.mxu0 %v902
      %930 = vmatprep.subr.mxu0 0.0
      %931 = vmatpush1.msra.mxu0 %v903
      %932 = vmatprep.subr.mxu0 0.0
      %933 = vmatpush1.msra.mxu0 %v904
      %934 = vmatprep.subr.mxu0 0.0
      %935 = vmatpush1.msra.mxu0 %v905
      %936 = vmatprep.subr.mxu0 0.0
      %937 = vmatpush1.msra.mxu0 %v906
      %938 = vmatprep.subr.mxu0 0.0
      %939 = vmatpush1.msra.mxu0 %v907
      %940 = vmatprep.subr.mxu0 0.0
      %941 = vmatpush1.msra.mxu0 %v908
      %942 = vmatprep.subr.mxu0 0.0
      %943 = vmatpush1.msra.mxu0 %v909
      %944 = vmatprep.subr.mxu0 0.0
      %945 = vmatpush1.msra.mxu0 %v910
      %946 = vmatprep.subr.mxu0 0.0
      %947 = vmatpush1.msra.mxu0 %v911
      %948 = vmatprep.subr.mxu0 0.0
      %949 = vmatpush1.msra.mxu0 %v912
      %950 = vmatprep.subr.mxu0 0.0
      %951 = vmatpush1.msra.mxu0 %v913
      %952 = vmatprep.subr.mxu0 0.0
      %953 = vmatpush1.msra.mxu0 %v914
      %954 = vmatprep.subr.mxu0 0.0
      %955 = vmatpush1.msra.mxu0 0.0
      %956 = vmatprep.subr.mxu0 0.0
      %957 = vmatpush1.msra.mxu0 0.0
      %958 = vmatprep.subr.mxu0 0.0
      %959 = vmatpush1.msra.mxu0 0.0
      %960 = vmatprep.subr.mxu0 0.0
      %961 = vmatpush1.msra.mxu0 0.0
      %962 = vmatprep.subr.mxu0 0.0
      %963 = vmatpush1.msra.mxu0 0.0
      %964 = vmatprep.subr.mxu0 0.0
      %965 = vmatpush1.msra.mxu0 0.0
      %966 = vmatprep.subr.mxu0 0.0
      %967 = vmatpush1.msra.mxu0 0.0
      %968 = vmatprep.subr.mxu0 0.0
      %969 = vmatpush1.msra.mxu0 0.0
      %970 = vmatprep.subr.mxu0 0.0
      %971 = vmatpush1.msra.mxu0 0.0
      %972 = vmatprep.subr.mxu0 0.0
      %973 = vmatpush1.msra.mxu0 0.0
      %974 = vmatprep.subr.mxu0 0.0
      %975 = vmatpush1.msra.mxu0 0.0
      %976 = vmatprep.subr.mxu0 0.0
      %977 = vmatpush1.msra.mxu0 0.0
      %978 = vmatprep.subr.mxu0 0.0
      %979 = vmatpush1.msra.mxu0 0.0
      %980 = vmatprep.subr.mxu0 0.0
      %981 = vmatpush1.msra.mxu0 0.0
      %982 = vmatprep.subr.mxu0 0.0
      %983 = vmatpush1.msra.mxu0 0.0
      %984 = vmatprep.subr.mxu0 0.0
      %985 = vmatpush1.msra.mxu0 0.0
      %986 = vmatprep.mubr.f32.mxu0 0.0
      %987 = vmatmul.mubr.f32.gmra.mrb[0].mxu0 %v898
      %v988 = vpop.f32.mrb[0].mxu0
      %v989 = vadd.f32 %v920, %v988
      %v990 = vpop.f32.mrb[0].mxu0
      %991 = vdwg.mxu0
      %992 = vst [vmem:[#allocation11] sm:$0xff] %v989
    $region53: #{tpu_custom_call.1} parent=1 // pred_fallthru
      _
    // Predicated region
    $region54: #{tpu_custom_call.1} parent=1 // pred_check
      _
    $region55: #{tpu_custom_call.1} parent=1 // pred_check_branch
      %994 = sbr.rel (0) target = $region57
    $region56: #{tpu_custom_call.1} parent=1 // pred_region
      %s996 = ssub.s32 128, 128
      %997 = vsyncadd [#allocation5], %s996
      %s999 = sshll.u32 [#allocation11], 4
      %s1000 = int_to_ptr.vmem [resolvable:$true] %s999
      %1002 = dma.vmem_to_hbm [thread:$0]  %s1000, 128, %s7, [#allocation5]
    $region57: #{tpu_custom_call.1} parent=1 // pred_fallthru
      _
    // Predicated region
    $region58: #{tpu_custom_call.1} parent=1 // pred_check
      _
    $region59: #{tpu_custom_call.1} parent=1 // pred_check_branch
      %1004 = sbr.rel (0) target = $region61
    $region60: #{tpu_custom_call.1} parent=1 // pred_region
      %1005 = dma.done [#allocation5], 128
    $region61: #{tpu_custom_call.1} parent=1 // pred_fallthru
      _
    %1006 = vsyncpa [#allocation4], 1
    %1007 = vsyncpa [#allocation7], 1
    %1008 = vsyncpa [#allocation10], 1
    %1009 = vsyncpa [#allocation5], 1

</llo_original>
